<compile_context>
chip_gen: v6e
topology: v6e:2x2x1
jax: 0.10.0
libtpu: 0.0.40
codegen_flags: <defaults>
</compile_context>

<pallas_src>
import jax
import jax.numpy as jnp
from jax.experimental import pallas as pl
from jax.experimental.pallas import tpu as pltpu

NEG_SLOPE = 0.01   # F.leaky_relu default negative_slope
TB_MAX = 2048      # max batch-tile rows per grid step


def _round_up(x, m):
    return ((x + m - 1) // m) * m


def _lrelu(x):
    return jnp.where(x > 0, x, NEG_SLOPE * x)


def critic_kernel(x_ref,                 # (tb, feat) bf16   packed [state|action]
                  wf_ref, b1_ref,        # (feat, fcs1+fc2) bf16 block-diag, (1, fcs1) f32
                  w2s_ref, b2_ref,       # (fcs1, fc2) bf16, (1, fc2) f32
                  w3_ref, b3_ref,        # (fc2, fc3) bf16, (1, fc3) f32
                  w4_ref, b4_ref,        # (8, fc3) bf16 (row 0 = fc4 weight), (1,1) f32 SMEM
                  out_ref):              # (1, 1, tb) f32
    fcs1 = b1_ref.shape[1]

    x = x_ref[...]                                   # bf16

    # Fused first MXU pass: y[:, :fcs1] = state @ W1 ; y[:, fcs1:] = action @ W2a
    y = jnp.dot(x, wf_ref[...], preferred_element_type=jnp.float32)

    # fcs1 + leaky_relu (f32 epilogue)
    xs = _lrelu(y[:, :fcs1] + b1_ref[...])

    # fc2 on cat(xs, action) == xs @ W2s + action @ W2a, + leaky_relu
    h2 = _lrelu(
        jnp.dot(xs.astype(jnp.bfloat16), w2s_ref[...],
                preferred_element_type=jnp.float32)
        + y[:, fcs1:] + b2_ref[...]
    )

    # fc3 + leaky_relu
    h3 = _lrelu(
        jnp.dot(h2.astype(jnp.bfloat16), w3_ref[...],
                preferred_element_type=jnp.float32)
        + b3_ref[...]
    )

    # fc4, lane-dense: contract over the last dims (attention-score pattern)
    # -> result lands directly in lanes as a (8, tb) f32 MXU output; take row 0.
    qf = jnp.einsum('ok,bk->ob', w4_ref[...], h3.astype(jnp.bfloat16),
                    preferred_element_type=jnp.float32)        # (8, tb)
    row = qf[0:1, :] + b4_ref[0, 0]                             # (1, tb)
    out_ref[...] = row.reshape(out_ref.shape)


def init_critic_params(key, state_size, action_size,
                       fcs1_units=256, fc2_units=256, fc3_units=128):
    """Init mimicking nn.Linear defaults (uniform +/- 1/sqrt(fan_in)).

    Weights are stored transposed to (in, out), packed for the kernel, in bf16;
    biases stay f32.
    """
    def linear(key, fan_in, fan_out):
        kw, kb = jax.random.split(key)
        bound = 1.0 / jnp.sqrt(jnp.float32(fan_in))
        w = jax.random.uniform(kw, (fan_in, fan_out), jnp.float32, -bound, bound)
        b = jax.random.uniform(kb, (1, fan_out), jnp.float32, -bound, bound)
        return w, b

    k1, k2, k3, k4 = jax.random.split(key, 4)
    w1, b1 = linear(k1, state_size, fcs1_units)
    w2, b2 = linear(k2, fcs1_units + action_size, fc2_units)
    w3, b3 = linear(k3, fc2_units, fc3_units)
    w4, b4 = linear(k4, fc3_units, 1)

    w2s = w2[:fcs1_units, :]     # rows acting on xs
    w2a = w2[fcs1_units:, :]     # rows acting on action

    # Block-diagonal fused weight: [state|action] @ Wf == [state@W1 | action@W2a]
    wf = jnp.zeros((state_size + action_size, fcs1_units + fc2_units), jnp.float32)
    wf = wf.at[:state_size, :fcs1_units].set(w1)
    wf = wf.at[state_size:, fcs1_units:].set(w2a)

    # fc4 weight as a lane-dense row, zero-padded to 8 sublanes for the MXU pass.
    w4pad = jnp.zeros((8, fc3_units), jnp.float32).at[0, :].set(w4[:, 0])

    return dict(
        wf=wf.astype(jnp.bfloat16), b1=b1,
        w2s=w2s.astype(jnp.bfloat16), b2=b2,
        w3=w3.astype(jnp.bfloat16), b3=b3,
        w4=w4pad.astype(jnp.bfloat16),
        b4=b4.astype(jnp.float32),          # (1, 1) scalar -> SMEM
    )


def critic_forward(state, action, params, tb_max=TB_MAX):
    B, state_size = state.shape
    action_size = action.shape[1]
    feat = state_size + action_size
    fcs1 = params["b1"].shape[1]
    fc2u = params["b2"].shape[1]
    fc3u = params["b3"].shape[1]

    # Pack state+action into one lane-contiguous bf16 input.
    x = jnp.concatenate([state, action], axis=1).astype(jnp.bfloat16)

    # Tile selection: multiple of 16 (bf16 sublane packing), capped by TB_MAX,
    # and chosen so batches > 16 rows get >= 2 grid steps (v7x megacore).
    b_ceil = _round_up(B, 16)
    tb = min(tb_max, max(16, _round_up(pl.cdiv(b_ceil, 2), 16)))
    b_pad = _round_up(B, tb)
    if b_pad != B:
        x = jnp.pad(x, ((0, b_pad - B), (0, 0)))
    num_tiles = b_pad // tb

    def resident(arr):
        # Full-array block, constant index map -> fetched once, VMEM-resident.
        return pl.BlockSpec(arr.shape, lambda i, n=arr.ndim: (0,) * n)

    args = (x,
            params["wf"], params["b1"],
            params["w2s"], params["b2"],
            params["w3"], params["b3"],
            params["w4"], params["b4"])

    in_specs = [
        pl.BlockSpec((tb, feat), lambda i: (i, 0)),          # packed rows (tiled)
        resident(params["wf"]), resident(params["b1"]),
        resident(params["w2s"]), resident(params["b2"]),
        resident(params["w3"]), resident(params["b3"]),
        resident(params["w4"]),
        pl.BlockSpec(memory_space=pltpu.MemorySpace.SMEM),   # b4 scalar in SMEM
    ]
    # Lane-dense output: one (1, 1, tb) row per grid step.
    out_specs = pl.BlockSpec((1, 1, tb), lambda i: (i, 0, 0))
    out_shape = jax.ShapeDtypeStruct((num_tiles, 1, tb), jnp.float32)

    flops = 2 * b_pad * (feat * (fcs1 + fc2u) + fcs1 * fc2u + fc2u * fc3u + 8 * fc3u)
    weight_bytes = sum(int(v.size) * v.dtype.itemsize for v in params.values())
    bytes_accessed = int(x.size) * x.dtype.itemsize + b_pad * 4 + weight_bytes
    ce = pl.CostEstimate(flops=int(flops), transcendentals=0,
                         bytes_accessed=int(bytes_accessed))

    out = pl.pallas_call(
        critic_kernel,
        out_shape=out_shape,
        grid=(num_tiles,),
        in_specs=in_specs,
        out_specs=out_specs,
        compiler_params=pltpu.CompilerParams(
            dimension_semantics=("parallel",),
            vmem_limit_bytes=32 * 1024 * 1024,   # guard v5e's 16 MiB default
        ),
        cost_estimate=ce,
    )(*args)

    return out.reshape(b_pad)[:B].reshape(B, 1)


def critic_forward_ref(state, action, p):
    """Pure-JAX f32 reference of the module semantics (bf16 weights upcast)."""
    s = state.shape[1]
    fcs1 = p["b1"].shape[1]
    wf = p["wf"].astype(jnp.float32)
    w1 = wf[:s, :fcs1]
    w2a = wf[s:, fcs1:]
    w2s = p["w2s"].astype(jnp.float32)
    w3 = p["w3"].astype(jnp.float32)
    w4 = p["w4"][0:1, :].astype(jnp.float32)      # (1, fc3)
    xs = jax.nn.leaky_relu(state @ w1 + p["b1"], NEG_SLOPE)
    h2 = jax.nn.leaky_relu(xs @ w2s + action @ w2a + p["b2"], NEG_SLOPE)
    h3 = jax.nn.leaky_relu(h2 @ w3 + p["b3"], NEG_SLOPE)
    return h3 @ w4.T + p["b4"]


if __name__ == "__main__":
    key = jax.random.PRNGKey(0)
    k_param, k_state, k_action = jax.random.split(key, 3)

    batch = 8
    state_size = 12   # e.g. [available_water, CropWater_n, CropGrowth_n, CropPrices_n]
    action_size = 4   # [WaterAmount_n]

    params = init_critic_params(k_param, state_size, action_size)
    state = jax.random.normal(k_state, (batch, state_size), jnp.float32)
    action = jax.random.normal(k_action, (batch, action_size), jnp.float32)

    q = critic_forward(state, action, params)
    jax.block_until_ready(q)

    q_ref = critic_forward_ref(state, action, params)
    assert q.shape == (batch, 1)
    # bf16 matmul operands vs f32 reference -> relaxed tolerance
    assert jnp.allclose(q, q_ref, atol=2e-2, rtol=2e-2), (q, q_ref)

    print("KERNEL_OK")
</pallas_src>

<mosaic_0001>
module attributes {stable_mosaic.version = 11 : i64} {
  func.func @critic_kernel(%arg0: i32, %arg1: memref<16x16xbf16, #tpu.memory_space<vmem>>, %arg2: memref<16x512xbf16, #tpu.memory_space<vmem>>, %arg3: memref<1x256xf32, #tpu.memory_space<vmem>>, %arg4: memref<256x256xbf16, #tpu.memory_space<vmem>>, %arg5: memref<1x256xf32, #tpu.memory_space<vmem>>, %arg6: memref<256x128xbf16, #tpu.memory_space<vmem>>, %arg7: memref<1x128xf32, #tpu.memory_space<vmem>>, %arg8: memref<8x128xbf16, #tpu.memory_space<vmem>>, %arg9: memref<1x1xf32, #tpu.memory_space<smem>>, %arg10: memref<1x1x16xf32, #tpu.memory_space<vmem>>) attributes {dimension_semantics = [#tpu.dimension_semantics<parallel>], iteration_bounds = array<i64: 1>, scalar_prefetch = 0 : i64, scratch_operands = 0 : i64, tpu.core_type = #tpu.core_type<tc>, window_params = [{transform_indices = @transform_0, window_bounds = array<i64: 16, 16>}, {pipeline_mode = #tpu.pipeline_mode<synchronous>, transform_indices = @transform_1, window_bounds = array<i64: 16, 512>}, {pipeline_mode = #tpu.pipeline_mode<synchronous>, transform_indices = @transform_2, window_bounds = array<i64: 1, 256>}, {pipeline_mode = #tpu.pipeline_mode<synchronous>, transform_indices = @transform_3, window_bounds = array<i64: 256, 256>}, {pipeline_mode = #tpu.pipeline_mode<synchronous>, transform_indices = @transform_4, window_bounds = array<i64: 1, 256>}, {pipeline_mode = #tpu.pipeline_mode<synchronous>, transform_indices = @transform_5, window_bounds = array<i64: 256, 128>}, {pipeline_mode = #tpu.pipeline_mode<synchronous>, transform_indices = @transform_6, window_bounds = array<i64: 1, 128>}, {pipeline_mode = #tpu.pipeline_mode<synchronous>, transform_indices = @transform_7, window_bounds = array<i64: 8, 128>}, {transform_indices = @transform_8, window_bounds = array<i64: 1, 1>}, {transform_indices = @transform_9, window_bounds = array<i64: 1, 1, 16>}]} {
    %c0 = arith.constant 0 : index
    %c0_0 = arith.constant 0 : index
    %0 = vector.load %arg1[%c0, %c0_0] : memref<16x16xbf16, #tpu.memory_space<vmem>>, vector<16x16xbf16>
    %c0_1 = arith.constant 0 : index
    %c0_2 = arith.constant 0 : index
    %1 = vector.load %arg2[%c0_1, %c0_2] : memref<16x512xbf16, #tpu.memory_space<vmem>>, vector<16x512xbf16>
    %cst = arith.constant dense<0.000000e+00> : vector<16x512xf32>
    %2 = tpu.matmul %0, %1, %cst {dimension_numbers = #tpu.dot_dimension_numbers<[1], [0], [0], [1], [0, 0, 1, 1], [], []>} : vector<16x16xbf16>, vector<16x512xbf16>, vector<16x512xf32> -> vector<16x512xf32>
    %3 = vector.extract_strided_slice %2 {offsets = [0, 0], sizes = [16, 256], strides = [1, 1]} : vector<16x512xf32> to vector<16x256xf32>
    %c0_3 = arith.constant 0 : index
    %c0_4 = arith.constant 0 : index
    %4 = vector.load %arg3[%c0_3, %c0_4] : memref<1x256xf32, #tpu.memory_space<vmem>>, vector<1x256xf32>
    %5 = vector.broadcast %4 : vector<1x256xf32> to vector<16x256xf32>
    %6 = arith.addf %3, %5 : vector<16x256xf32>
    %cst_5 = arith.constant 0.000000e+00 : f32
    %7 = vector.broadcast %cst_5 : f32 to vector<16x256xf32>
    %8 = arith.cmpf ogt, %6, %7 : vector<16x256xf32>
    %cst_6 = arith.constant 0.00999999977 : f32
    %9 = vector.broadcast %cst_6 : f32 to vector<16x256xf32>
    %10 = arith.mulf %9, %6 : vector<16x256xf32>
    %11 = arith.select %8, %6, %10 : vector<16x256xi1>, vector<16x256xf32>
    %12 = arith.truncf %11 : vector<16x256xf32> to vector<16x256xbf16>
    %c0_7 = arith.constant 0 : index
    %c0_8 = arith.constant 0 : index
    %13 = vector.load %arg4[%c0_7, %c0_8] : memref<256x256xbf16, #tpu.memory_space<vmem>>, vector<256x256xbf16>
    %cst_9 = arith.constant dense<0.000000e+00> : vector<16x256xf32>
    %14 = tpu.matmul %12, %13, %cst_9 {dimension_numbers = #tpu.dot_dimension_numbers<[1], [0], [0], [1], [0, 0, 1, 1], [], []>} : vector<16x256xbf16>, vector<256x256xbf16>, vector<16x256xf32> -> vector<16x256xf32>
    %15 = vector.extract_strided_slice %2 {offsets = [0, 256], sizes = [16, 256], strides = [1, 1]} : vector<16x512xf32> to vector<16x256xf32>
    %16 = arith.addf %14, %15 : vector<16x256xf32>
    %c0_10 = arith.constant 0 : index
    %c0_11 = arith.constant 0 : index
    %17 = vector.load %arg5[%c0_10, %c0_11] : memref<1x256xf32, #tpu.memory_space<vmem>>, vector<1x256xf32>
    %18 = vector.broadcast %17 : vector<1x256xf32> to vector<16x256xf32>
    %19 = arith.addf %16, %18 : vector<16x256xf32>
    %cst_12 = arith.constant 0.000000e+00 : f32
    %20 = vector.broadcast %cst_12 : f32 to vector<16x256xf32>
    %21 = arith.cmpf ogt, %19, %20 : vector<16x256xf32>
    %cst_13 = arith.constant 0.00999999977 : f32
    %22 = vector.broadcast %cst_13 : f32 to vector<16x256xf32>
    %23 = arith.mulf %22, %19 : vector<16x256xf32>
    %24 = arith.select %21, %19, %23 : vector<16x256xi1>, vector<16x256xf32>
    %25 = arith.truncf %24 : vector<16x256xf32> to vector<16x256xbf16>
    %c0_14 = arith.constant 0 : index
    %c0_15 = arith.constant 0 : index
    %26 = vector.load %arg6[%c0_14, %c0_15] : memref<256x128xbf16, #tpu.memory_space<vmem>>, vector<256x128xbf16>
    %cst_16 = arith.constant dense<0.000000e+00> : vector<16x128xf32>
    %27 = tpu.matmul %25, %26, %cst_16 {dimension_numbers = #tpu.dot_dimension_numbers<[1], [0], [0], [1], [0, 0, 1, 1], [], []>} : vector<16x256xbf16>, vector<256x128xbf16>, vector<16x128xf32> -> vector<16x128xf32>
    %c0_17 = arith.constant 0 : index
    %c0_18 = arith.constant 0 : index
    %28 = vector.load %arg7[%c0_17, %c0_18] : memref<1x128xf32, #tpu.memory_space<vmem>>, vector<1x128xf32>
    %29 = vector.broadcast %28 : vector<1x128xf32> to vector<16x128xf32>
    %30 = arith.addf %27, %29 : vector<16x128xf32>
    %cst_19 = arith.constant 0.000000e+00 : f32
    %31 = vector.broadcast %cst_19 : f32 to vector<16x128xf32>
    %32 = arith.cmpf ogt, %30, %31 : vector<16x128xf32>
    %cst_20 = arith.constant 0.00999999977 : f32
    %33 = vector.broadcast %cst_20 : f32 to vector<16x128xf32>
    %34 = arith.mulf %33, %30 : vector<16x128xf32>
    %35 = arith.select %32, %30, %34 : vector<16x128xi1>, vector<16x128xf32>
    %c0_21 = arith.constant 0 : index
    %c0_22 = arith.constant 0 : index
    %36 = vector.load %arg8[%c0_21, %c0_22] : memref<8x128xbf16, #tpu.memory_space<vmem>>, vector<8x128xbf16>
    %37 = arith.truncf %35 : vector<16x128xf32> to vector<16x128xbf16>
    "tpu.trace_start"() <{level = 10 : i32, message = "ok,bk->ob"}> : () -> ()
    %cst_23 = arith.constant dense<0.000000e+00> : vector<8x16xf32>
    %38 = tpu.matmul %36, %37, %cst_23 {dimension_numbers = #tpu.dot_dimension_numbers<[1], [1], [0], [0], [0, 0, 1, 0], [], []>} : vector<8x128xbf16>, vector<16x128xbf16>, vector<8x16xf32> -> vector<8x16xf32>
    "tpu.trace_stop"() : () -> ()
    %39 = vector.extract_strided_slice %38 {offsets = [0, 0], sizes = [1, 16], strides = [1, 1]} : vector<8x16xf32> to vector<1x16xf32>
    %c0_24 = arith.constant 0 : index
    %c0_25 = arith.constant 0 : index
    %40 = memref.load %arg9[%c0_24, %c0_25] : memref<1x1xf32, #tpu.memory_space<smem>>
    %41 = vector.broadcast %40 : f32 to vector<1x16xf32>
    %42 = arith.addf %39, %41 : vector<1x16xf32>
    %43 = vector.shape_cast %42 : vector<1x16xf32> to vector<1x1x16xf32>
    %c0_26 = arith.constant 0 : index
    %c0_27 = arith.constant 0 : index
    %c0_28 = arith.constant 0 : index
    %44 = vector.load %arg10[%c0_26, %c0_27, %c0_28] : memref<1x1x16xf32, #tpu.memory_space<vmem>>, vector<1x1x16xf32>
    tpu.vector_store %arg10[%c0_26, %c0_27, %c0_28], %43 {strides = array<i32>} : memref<1x1x16xf32, #tpu.memory_space<vmem>>, vector<1x1x16xf32>,
    return
  }
  func.func @transform_0(%arg0: i32) -> (i32, i32) {
    %c0_i32 = arith.constant 0 : i32
    %c0_i32_0 = arith.constant 0 : i32
    return %arg0, %c0_i32 : i32, i32
  }
  func.func @transform_1(%arg0: i32) -> (i32, i32) {
    %c0_i32 = arith.constant 0 : i32
    %c0_i32_0 = arith.constant 0 : i32
    %c0_i32_1 = arith.constant 0 : i32
    return %c0_i32, %c0_i32_0 : i32, i32
  }
  func.func @transform_2(%arg0: i32) -> (i32, i32) {
    %c0_i32 = arith.constant 0 : i32
    %c0_i32_0 = arith.constant 0 : i32
    %c0_i32_1 = arith.constant 0 : i32
    return %c0_i32, %c0_i32_0 : i32, i32
  }
  func.func @transform_3(%arg0: i32) -> (i32, i32) {
    %c0_i32 = arith.constant 0 : i32
    %c0_i32_0 = arith.constant 0 : i32
    %c0_i32_1 = arith.constant 0 : i32
    return %c0_i32, %c0_i32_0 : i32, i32
  }
  func.func @transform_4(%arg0: i32) -> (i32, i32) {
    %c0_i32 = arith.constant 0 : i32
    %c0_i32_0 = arith.constant 0 : i32
    %c0_i32_1 = arith.constant 0 : i32
    return %c0_i32, %c0_i32_0 : i32, i32
  }
  func.func @transform_5(%arg0: i32) -> (i32, i32) {
    %c0_i32 = arith.constant 0 : i32
    %c0_i32_0 = arith.constant 0 : i32
    %c0_i32_1 = arith.constant 0 : i32
    return %c0_i32, %c0_i32_0 : i32, i32
  }
  func.func @transform_6(%arg0: i32) -> (i32, i32) {
    %c0_i32 = arith.constant 0 : i32
    %c0_i32_0 = arith.constant 0 : i32
    %c0_i32_1 = arith.constant 0 : i32
    return %c0_i32, %c0_i32_0 : i32, i32
  }
  func.func @transform_7(%arg0: i32) -> (i32, i32) {
    %c0_i32 = arith.constant 0 : i32
    %c0_i32_0 = arith.constant 0 : i32
    %c0_i32_1 = arith.constant 0 : i32
    return %c0_i32, %c0_i32_0 : i32, i32
  }
  func.func @transform_8(%arg0: i32) -> (i32, i32) {
    %c0_i32 = arith.constant 0 : i32
    %c0_i32_0 = arith.constant 0 : i32
    %c0_i32_1 = arith.constant 0 : i32
    return %c0_i32, %c0_i32_0 : i32, i32
  }
  func.func @transform_9(%arg0: i32) -> (i32, i32, i32) {
    %c0_i32 = arith.constant 0 : i32
    %c0_i32_0 = arith.constant 0 : i32
    %c0_i32_1 = arith.constant 0 : i32
    return %arg0, %c0_i32, %c0_i32_0 : i32, i32, i32
  }
}

</mosaic_0001>

<llo_original>
// kernel: tpu_custom_call.1
$region0: #{tpu_custom_call.1}
  #allocation0 [shape = 'u32[]', space=smem, size = 0x4, offset = 0x4, fixed_abs, tag = 'smem constant byte address 0x4 - core index']
  #allocation1 [shape = 'u32[144,128]{1,0:T(1,128)}', space=vmem, size = 0x12000, scoped, tag = 'internal scratch']
  #allocation2 [shape = 'f32[1,1]{1,0:T(1,128)S(6)}', space=smem, size = 0x200, scoped, tag = 'scoped memory for tpu_custom_call.1']
  %s0 = inlined_call_operand.hbm [shape: bf16[16,16], index: 0, kind: input, shape index: {}]
  %s1 = inlined_call_operand.hbm [shape: bf16[16,512], index: 1, kind: input, shape index: {}]
  %s2 = inlined_call_operand.vmem [shape: f32[1,256], index: 2, kind: input, shape index: {}]
  %s3 = inlined_call_operand.hbm [shape: bf16[256,256], index: 3, kind: input, shape index: {}]
  %s4 = inlined_call_operand.vmem [shape: f32[1,256], index: 4, kind: input, shape index: {}]
  %s5 = inlined_call_operand.hbm [shape: bf16[256,128], index: 5, kind: input, shape index: {}]
  %s6 = inlined_call_operand.vmem [shape: f32[1,128], index: 6, kind: input, shape index: {}]
  %s7 = inlined_call_operand.vmem [shape: bf16[8,128], index: 7, kind: input, shape index: {}]
  %s8 = inlined_call_operand.<no memory space> [shape: f32[1,1], index: 8, kind: input, shape index: {}]
  %s9 = inlined_call_operand.hbm [shape: f32[1,1,16], index: 9, kind: output, shape index: {}]
  %s10 = sld [smem:[#allocation0]]
  $region62: #{tpu_custom_call.1} parent=0
    _
  %s12 = ssub.s32 1, %s10
  %s13 = scalar_select 0, %s12, %s10
  %14 = sst [smem:[#allocation2]] %s8
  $region1: #{tpu_custom_call.1} parent=0
    #allocation3 [shape = 'u8[4096]{0}', space=vmem, size = 0x1000, scoped, tag = 'input window, operand 0, single buffered']
    #allocation4 [shape = 's32[1]{0}', space=sflag, size = 0x4, scoped, tag = 'scoped memory for tpu_custom_call.1']
    #allocation5 [shape = 's32[1]{0}', space=sflag, size = 0x4, scoped, tag = 'scoped memory for tpu_custom_call.1']
    #allocation6 [shape = 'u8[16384]{0}', space=vmem, size = 0x4000, scoped, tag = 'input window, operand 1, single buffered']
    #allocation7 [shape = 's32[1]{0}', space=sflag, size = 0x4, scoped, tag = 'scoped memory for tpu_custom_call.1']
    #allocation8 [shape = 'u8[131072]{0}', space=vmem, size = 0x20000, scoped, tag = 'input window, operand 3, single buffered']
    #allocation9 [shape = 'u8[65536]{0}', space=vmem, size = 0x10000, scoped, tag = 'input window, operand 5, single buffered']
    #allocation10 [shape = 's32[1]{0}', space=sflag, size = 0x4, scoped, tag = 'scoped memory for tpu_custom_call.1']
    #allocation11 [shape = 'u8[512]{0}', space=vmem, size = 0x400, scoped, tag = 'output window, operand 0, single buffered']
    %15 = vsyncpa [#allocation4], 0
    %16 = vsyncpa [#allocation7], 0
    %17 = vsyncpa [#allocation10], 0
    %18 = vsyncpa [#allocation5], 0
    // Predicated region
    $region2: #{tpu_custom_call.1} parent=1 // pred_check
      _
    $region3: #{tpu_custom_call.1} parent=1 // pred_check_branch
      %20 = sbr.rel (0) target = $region5
    $region4: #{tpu_custom_call.1} parent=1 // pred_region
      %s22 = ssub.s32 128, 128
      %23 = vsyncadd [#allocation4], %s22
      %s24 = sshll.u32 [#allocation3], 4
      %s25 = int_to_ptr.vmem [resolvable:$true] %s24
      %30 = dma.hbm_to_vmem [thread:$0]  %s0, 128, %s25, [#allocation4], 64, 64, 4
    $region5: #{tpu_custom_call.1} parent=1 // pred_fallthru
      _
    // Predicated region
    $region6: #{tpu_custom_call.1} parent=1 // pred_check
      _
    $region7: #{tpu_custom_call.1} parent=1 // pred_check_branch
      %32 = sbr.rel (0) target = $region9
    $region8: #{tpu_custom_call.1} parent=1 // pred_region
      %s34 = ssub.s32 512, 512
      %35 = vsyncadd [#allocation7], %s34
      %s36 = sshll.u32 [#allocation6], 4
      %s37 = int_to_ptr.vmem [resolvable:$true] %s36
      %42 = dma.hbm_to_vmem [thread:$0]  %s1, 512, %s37, [#allocation7], 256, 256, 16
    $region9: #{tpu_custom_call.1} parent=1 // pred_fallthru
      _
    // Predicated region
    $region10: #{tpu_custom_call.1} parent=1 // pred_check
      _
    $region11: #{tpu_custom_call.1} parent=1 // pred_check_branch
      %44 = sbr.rel (0) target = $region13
    $region12: #{tpu_custom_call.1} parent=1 // pred_region
      _
    $region13: #{tpu_custom_call.1} parent=1 // pred_fallthru
      _
    // Predicated region
    $region14: #{tpu_custom_call.1} parent=1 // pred_check
      _
    $region15: #{tpu_custom_call.1} parent=1 // pred_check_branch
      %46 = sbr.rel (0) target = $region17
    $region16: #{tpu_custom_call.1} parent=1 // pred_region
      %s48 = ssub.s32 4096, 4096
      %49 = vsyncadd [#allocation7], %s48
      %s50 = sshll.u32 [#allocation8], 4
      %s51 = int_to_ptr.vmem [resolvable:$true] %s50
      %56 = dma.hbm_to_vmem [thread:$0]  %s3, 4096, %s51, [#allocation7], 128, 128, 8
    $region17: #{tpu_custom_call.1} parent=1 // pred_fallthru
      _
    // Predicated region
    $region18: #{tpu_custom_call.1} parent=1 // pred_check
      _
    $region19: #{tpu_custom_call.1} parent=1 // pred_check_branch
      %58 = sbr.rel (0) target = $region21
    $region20: #{tpu_custom_call.1} parent=1 // pred_region
      _
    $region21: #{tpu_custom_call.1} parent=1 // pred_fallthru
      _
    // Predicated region
    $region22: #{tpu_custom_call.1} parent=1 // pred_check
      _
    $region23: #{tpu_custom_call.1} parent=1 // pred_check_branch
      %60 = sbr.rel (0) target = $region25
    $region24: #{tpu_custom_call.1} parent=1 // pred_region
      %s62 = ssub.s32 2048, 2048
      %63 = vsyncadd [#allocation10], %s62
      %s64 = sshll.u32 [#allocation9], 4
      %s65 = int_to_ptr.vmem [resolvable:$true] %s64
      %70 = dma.hbm_to_vmem [thread:$0]  %s5, 2048, %s65, [#allocation10], 64, 64, 4
    $region25: #{tpu_custom_call.1} parent=1 // pred_fallthru
      _
    // Predicated region
    $region26: #{tpu_custom_call.1} parent=1 // pred_check
      _
    $region27: #{tpu_custom_call.1} parent=1 // pred_check_branch
      %72 = sbr.rel (0) target = $region29
    $region28: #{tpu_custom_call.1} parent=1 // pred_region
      _
    $region29: #{tpu_custom_call.1} parent=1 // pred_fallthru
      _
    // Predicated region
    $region30: #{tpu_custom_call.1} parent=1 // pred_check
      _
    $region31: #{tpu_custom_call.1} parent=1 // pred_check_branch
      %74 = sbr.rel (0) target = $region33
    $region32: #{tpu_custom_call.1} parent=1 // pred_region
      _
    $region33: #{tpu_custom_call.1} parent=1 // pred_fallthru
      _
    // Predicated region
    $region34: #{tpu_custom_call.1} parent=1 // pred_check
      _
    $region35: #{tpu_custom_call.1} parent=1 // pred_check_branch
      %76 = sbr.rel (0) target = $region37
    $region36: #{tpu_custom_call.1} parent=1 // pred_region
      _
    $region37: #{tpu_custom_call.1} parent=1 // pred_fallthru
      _
    // Predicated region
    $region38: #{tpu_custom_call.1} parent=1 // pred_check
      _
    $region39: #{tpu_custom_call.1} parent=1 // pred_check_branch
      %78 = sbr.rel (0) target = $region41
    $region40: #{tpu_custom_call.1} parent=1 // pred_region
      %79 = dma.done [#allocation4], 128
    $region41: #{tpu_custom_call.1} parent=1 // pred_fallthru
      _
    // Predicated region
    $region42: #{tpu_custom_call.1} parent=1 // pred_check
      _
    $region43: #{tpu_custom_call.1} parent=1 // pred_check_branch
      %81 = sbr.rel (0) target = $region45
    $region44: #{tpu_custom_call.1} parent=1 // pred_region
      %82 = dma.done [#allocation7], 512
    $region45: #{tpu_custom_call.1} parent=1 // pred_fallthru
      _
    // Predicated region
    $region46: #{tpu_custom_call.1} parent=1 // pred_check
      _
    $region47: #{tpu_custom_call.1} parent=1 // pred_check_branch
      %84 = sbr.rel (0) target = $region49
    $region48: #{tpu_custom_call.1} parent=1 // pred_region
      %85 = dma.done [#allocation7], 4096
    $region49: #{tpu_custom_call.1} parent=1 // pred_fallthru
      _
    // Predicated region
    $region50: #{tpu_custom_call.1} parent=1 // pred_check
      _
    $region51: #{tpu_custom_call.1} parent=1 // pred_check_branch
      %87 = sbr.rel (0) target = $region53
    $region52: #{tpu_custom_call.1} parent=1 // pred_region
      %88 = dma.done [#allocation10], 2048
    $region53: #{tpu_custom_call.1} parent=1 // pred_fallthru
      _
    %v90 = vld [vmem:[#allocation3] sm:$0xf]
    %v91 = vld [vmem:[#allocation3 + $0x4] sm:$0xf]
    %v92 = vld [vmem:[#allocation6] sm:$0xff]
    %v93 = vld [vmem:[#allocation6 + $0x8] sm:$0xff]
    %v94 = vld [vmem:[#allocation6 + $0x10] sm:$0xff]
    %v95 = vld [vmem:[#allocation6 + $0x18] sm:$0xff]
    %v98 = vunpack.c.l.b16 %v90
    %v99 = vunpack.c.l.b16 %v91
    %v100 = vpack.c.b16 %v99, %v98
    %v105 = vunpack.c.l.b16 %v92
    %v106 = vunpack.c.h.b16 %v92
    %v107 = vunpack.c.l.b16 %v93
    %v108 = vunpack.c.h.b16 %v93
    %v109 = vunpack.c.l.b16 %v94
    %v110 = vunpack.c.h.b16 %v94
    %v111 = vunpack.c.l.b16 %v95
    %v112 = vunpack.c.h.b16 %v95
    %v113 = vpack.c.b16 %v109, %v105
    %v114 = vpack.c.b16 %v110, %v106
    %v115 = vpack.c.b16 %v111, %v107
    %v116 = vpack.c.b16 %v112, %v108
    %vm121 = vcmask 130048
    %v123 = vsel %vm121, %v100, 0
    %125 = vmatprep.subr.bf16.mxu0 0
    %126 = vmatpush1.bf16.msra.mxu0 0
    %127 = vmatprep.subr.bf16.mxu0 0
    %128 = vmatpush1.bf16.msra.mxu0 0
    %129 = vmatprep.subr.bf16.mxu0 0
    %130 = vmatpush1.bf16.msra.mxu0 0
    %131 = vmatprep.subr.bf16.mxu0 0
    %132 = vmatpush1.bf16.msra.mxu0 0
    %133 = vmatprep.subr.bf16.mxu0 0
    %134 = vmatpush1.bf16.msra.mxu0 0
    %135 = vmatprep.subr.bf16.mxu0 0
    %136 = vmatpush1.bf16.msra.mxu0 0
    %137 = vmatprep.subr.bf16.mxu0 0
    %138 = vmatpush1.bf16.msra.mxu0 0
    %139 = vmatprep.subr.bf16.mxu0 %v114
    %140 = vmatpush1.bf16.msra.mxu0 %v113
    %141 = vmatprep.subr.bf16.mxu0 0
    %142 = vmatpush2.bf16.msra.mxu0 0
    %143 = vmatprep.subr.bf16.mxu0 0
    %144 = vmatpush2.bf16.msra.mxu0 0
    %145 = vmatprep.subr.bf16.mxu0 0
    %146 = vmatpush2.bf16.msra.mxu0 0
    %147 = vmatprep.subr.bf16.mxu0 0
    %148 = vmatpush2.bf16.msra.mxu0 0
    %149 = vmatprep.subr.bf16.mxu0 0
    %150 = vmatpush2.bf16.msra.mxu0 0
    %151 = vmatprep.subr.bf16.mxu0 0
    %152 = vmatpush2.bf16.msra.mxu0 0
    %153 = vmatprep.subr.bf16.mxu0 0
    %154 = vmatpush2.bf16.msra.mxu0 0
    %155 = vmatprep.subr.bf16.mxu0 0
    %156 = vmatpush2.bf16.msra.mxu0 0
    %157 = vmatprep.mubr.bf16.mxu0 0
    %158 = vmatmul.mubr.bf16.gmra.mxu0 %v123
    %v159 = vpop.f32.mrf.mxu0
    %v160 = vadd.f32 0.0, %v159
    %v161 = vpop.f32.mrf.mxu0
    %v162 = vadd.f32 0.0, %v161
    %v163 = vpop.f32.mrf.mxu0
    %v164 = vadd.f32 0.0, %v163
    %v165 = vpop.f32.mrf.mxu0
    %v166 = vadd.f32 0.0, %v165
    %167 = vdwg.mxu0
    %168 = vmatprep.subr.bf16.mxu0 0
    %169 = vmatpush1.bf16.msra.mxu0 0
    %170 = vmatprep.subr.bf16.mxu0 0
    %171 = vmatpush1.bf16.msra.mxu0 0
    %172 = vmatprep.subr.bf16.mxu0 0
    %173 = vmatpush1.bf16.msra.mxu0 0
    %174 = vmatprep.subr.bf16.mxu0 0
    %175 = vmatpush1.bf16.msra.mxu0 0
    %176 = vmatprep.subr.bf16.mxu0 0
    %177 = vmatpush1.bf16.msra.mxu0 0
    %178 = vmatprep.subr.bf16.mxu0 0
    %179 = vmatpush1.bf16.msra.mxu0 0
    %180 = vmatprep.subr.bf16.mxu0 0
    %181 = vmatpush1.bf16.msra.mxu0 0
    %182 = vmatprep.subr.bf16.mxu0 %v116
    %183 = vmatpush1.bf16.msra.mxu0 %v115
    %184 = vmatprep.subr.bf16.mxu0 0
    %185 = vmatpush2.bf16.msra.mxu0 0
    %186 = vmatprep.subr.bf16.mxu0 0
    %187 = vmatpush2.bf16.msra.mxu0 0
    %188 = vmatprep.subr.bf16.mxu0 0
    %189 = vmatpush2.bf16.msra.mxu0 0
    %190 = vmatprep.subr.bf16.mxu0 0
    %191 = vmatpush2.bf16.msra.mxu0 0
    %192 = vmatprep.subr.bf16.mxu0 0
    %193 = vmatpush2.bf16.msra.mxu0 0
    %194 = vmatprep.subr.bf16.mxu0 0
    %195 = vmatpush2.bf16.msra.mxu0 0
    %196 = vmatprep.subr.bf16.mxu0 0
    %197 = vmatpush2.bf16.msra.mxu0 0
    %198 = vmatprep.subr.bf16.mxu0 0
    %199 = vmatpush2.bf16.msra.mxu0 0
    %200 = vmatprep.mubr.bf16.mxu0 0
    %201 = vmatmul.mubr.bf16.gmra.mxu0 %v123
    %v202 = vpop.f32.mrf.mxu0
    %v203 = vadd.f32 0.0, %v202
    %v204 = vpop.f32.mrf.mxu0
    %v205 = vadd.f32 0.0, %v204
    %v206 = vpop.f32.mrf.mxu0
    %v207 = vadd.f32 0.0, %v206
    %v208 = vpop.f32.mrf.mxu0
    %v209 = vadd.f32 0.0, %v208
    %210 = vdwg.mxu0
    %v211 = vld [vmem:[%s2] sm:$0x3]
    %v213 = vlaneseq
    %v214 = vshrl.u32 %v213, 7
    %v215 = vsub.s32 0, %v214
    %v216 = vrot.slane %v211, %v215
    %v217 = vlaneseq
    %v218 = vshrl.u32 %v217, 7
    %v219 = vsub.s32 1, %v218
    %v220 = vrot.slane %v211, %v219
    %v223 = vadd.f32 %v160, %v216
    %v224 = vadd.f32 %v162, %v220
    %v225 = vadd.f32 %v164, %v216
    %v226 = vadd.f32 %v166, %v220
    %vm227 = vcmp.gt.f32.partialorder %v223, 0.0
    %vm228 = vcmp.gt.f32.partialorder %v224, 0.0
    %vm229 = vcmp.gt.f32.partialorder %v225, 0.0
    %vm230 = vcmp.gt.f32.partialorder %v226, 0.0
    %v231 = vmul.f32 %v223, 0.01
    %v232 = vmul.f32 %v224, 0.01
    %v233 = vmul.f32 %v225, 0.01
    %v234 = vmul.f32 %v226, 0.01
    %v235 = vsel %vm227, %v223, %v231
    %v236 = vsel %vm228, %v224, %v232
    %v237 = vsel %vm229, %v225, %v233
    %v238 = vsel %vm230, %v226, %v234
    %v239 = vpack.c.bf16 %v237, %v235
    %v240 = vpack.c.bf16 %v238, %v236
    %v241 = vld [vmem:[#allocation8] sm:$0xff]
    %v242 = vld [vmem:[#allocation8 + $0x8] sm:$0xff]
    %v243 = vld [vmem:[#allocation8 + $0x10] sm:$0xff]
    %v244 = vld [vmem:[#allocation8 + $0x18] sm:$0xff]
    %v245 = vld [vmem:[#allocation8 + $0x20] sm:$0xff]
    %v246 = vld [vmem:[#allocation8 + $0x28] sm:$0xff]
    %v247 = vld [vmem:[#allocation8 + $0x30] sm:$0xff]
    %v248 = vld [vmem:[#allocation8 + $0x38] sm:$0xff]
    %v249 = vld [vmem:[#allocation8 + $0x40] sm:$0xff]
    %v250 = vld [vmem:[#allocation8 + $0x48] sm:$0xff]
    %v251 = vld [vmem:[#allocation8 + $0x50] sm:$0xff]
    %v252 = vld [vmem:[#allocation8 + $0x58] sm:$0xff]
    %v253 = vld [vmem:[#allocation8 + $0x60] sm:$0xff]
    %v254 = vld [vmem:[#allocation8 + $0x68] sm:$0xff]
    %v255 = vld [vmem:[#allocation8 + $0x70] sm:$0xff]
    %v256 = vld [vmem:[#allocation8 + $0x78] sm:$0xff]
    %v257 = vld [vmem:[#allocation8 + $0x80] sm:$0xff]
    %v258 = vld [vmem:[#allocation8 + $0x88] sm:$0xff]
    %v259 = vld [vmem:[#allocation8 + $0x90] sm:$0xff]
    %v260 = vld [vmem:[#allocation8 + $0x98] sm:$0xff]
    %v261 = vld [vmem:[#allocation8 + $0xa0] sm:$0xff]
    %v262 = vld [vmem:[#allocation8 + $0xa8] sm:$0xff]
    %v263 = vld [vmem:[#allocation8 + $0xb0] sm:$0xff]
    %v264 = vld [vmem:[#allocation8 + $0xb8] sm:$0xff]
    %v265 = vld [vmem:[#allocation8 + $0xc0] sm:$0xff]
    %v266 = vld [vmem:[#allocation8 + $0xc8] sm:$0xff]
    %v267 = vld [vmem:[#allocation8 + $0xd0] sm:$0xff]
    %v268 = vld [vmem:[#allocation8 + $0xd8] sm:$0xff]
    %v269 = vld [vmem:[#allocation8 + $0xe0] sm:$0xff]
    %v270 = vld [vmem:[#allocation8 + $0xe8] sm:$0xff]
    %v271 = vld [vmem:[#allocation8 + $0xf0] sm:$0xff]
    %v272 = vld [vmem:[#allocation8 + $0xf8] sm:$0xff]
    %v305 = vunpack.c.l.b16 %v241
    %v306 = vunpack.c.h.b16 %v241
    %v307 = vunpack.c.l.b16 %v242
    %v308 = vunpack.c.h.b16 %v242
    %v309 = vunpack.c.l.b16 %v243
    %v310 = vunpack.c.h.b16 %v243
    %v311 = vunpack.c.l.b16 %v244
    %v312 = vunpack.c.h.b16 %v244
    %v313 = vunpack.c.l.b16 %v245
    %v314 = vunpack.c.h.b16 %v245
    %v315 = vunpack.c.l.b16 %v246
    %v316 = vunpack.c.h.b16 %v246
    %v317 = vunpack.c.l.b16 %v247
    %v318 = vunpack.c.h.b16 %v247
    %v319 = vunpack.c.l.b16 %v248
    %v320 = vunpack.c.h.b16 %v248
    %v321 = vunpack.c.l.b16 %v249
    %v322 = vunpack.c.h.b16 %v249
    %v323 = vunpack.c.l.b16 %v250
    %v324 = vunpack.c.h.b16 %v250
    %v325 = vunpack.c.l.b16 %v251
    %v326 = vunpack.c.h.b16 %v251
    %v327 = vunpack.c.l.b16 %v252
    %v328 = vunpack.c.h.b16 %v252
    %v329 = vunpack.c.l.b16 %v253
    %v330 = vunpack.c.h.b16 %v253
    %v331 = vunpack.c.l.b16 %v254
    %v332 = vunpack.c.h.b16 %v254
    %v333 = vunpack.c.l.b16 %v255
    %v334 = vunpack.c.h.b16 %v255
    %v335 = vunpack.c.l.b16 %v256
    %v336 = vunpack.c.h.b16 %v256
    %v337 = vunpack.c.l.b16 %v257
    %v338 = vunpack.c.h.b16 %v257
    %v339 = vunpack.c.l.b16 %v258
    %v340 = vunpack.c.h.b16 %v258
    %v341 = vunpack.c.l.b16 %v259
    %v342 = vunpack.c.h.b16 %v259
    %v343 = vunpack.c.l.b16 %v260
    %v344 = vunpack.c.h.b16 %v260
    %v345 = vunpack.c.l.b16 %v261
    %v346 = vunpack.c.h.b16 %v261
    %v347 = vunpack.c.l.b16 %v262
    %v348 = vunpack.c.h.b16 %v262
    %v349 = vunpack.c.l.b16 %v263
    %v350 = vunpack.c.h.b16 %v263
    %v351 = vunpack.c.l.b16 %v264
    %v352 = vunpack.c.h.b16 %v264
    %v353 = vunpack.c.l.b16 %v265
    %v354 = vunpack.c.h.b16 %v265
    %v355 = vunpack.c.l.b16 %v266
    %v356 = vunpack.c.h.b16 %v266
    %v357 = vunpack.c.l.b16 %v267
    %v358 = vunpack.c.h.b16 %v267
    %v359 = vunpack.c.l.b16 %v268
    %v360 = vunpack.c.h.b16 %v268
    %v361 = vunpack.c.l.b16 %v269
    %v362 = vunpack.c.h.b16 %v269
    %v363 = vunpack.c.l.b16 %v270
    %v364 = vunpack.c.h.b16 %v270
    %v365 = vunpack.c.l.b16 %v271
    %v366 = vunpack.c.h.b16 %v271
    %v367 = vunpack.c.l.b16 %v272
    %v368 = vunpack.c.h.b16 %v272
    %v369 = vpack.c.b16 %v307, %v305
    %v370 = vpack.c.b16 %v308, %v306
    %v371 = vpack.c.b16 %v311, %v309
    %v372 = vpack.c.b16 %v312, %v310
    %v373 = vpack.c.b16 %v315, %v313
    %v374 = vpack.c.b16 %v316, %v314
    %v375 = vpack.c.b16 %v319, %v317
    %v376 = vpack.c.b16 %v320, %v318
    %v377 = vpack.c.b16 %v323, %v321
    %v378 = vpack.c.b16 %v324, %v322
    %v379 = vpack.c.b16 %v327, %v325
    %v380 = vpack.c.b16 %v328, %v326
    %v381 = vpack.c.b16 %v331, %v329
    %v382 = vpack.c.b16 %v332, %v330
    %v383 = vpack.c.b16 %v335, %v333
    %v384 = vpack.c.b16 %v336, %v334
    %v385 = vpack.c.b16 %v339, %v337
    %v386 = vpack.c.b16 %v340, %v338
    %v387 = vpack.c.b16 %v343, %v341
    %v388 = vpack.c.b16 %v344, %v342
    %v389 = vpack.c.b16 %v347, %v345
    %v390 = vpack.c.b16 %v348, %v346
    %v391 = vpack.c.b16 %v351, %v349
    %v392 = vpack.c.b16 %v352, %v350
    %v393 = vpack.c.b16 %v355, %v353
    %v394 = vpack.c.b16 %v356, %v354
    %v395 = vpack.c.b16 %v359, %v357
    %v396 = vpack.c.b16 %v360, %v358
    %v397 = vpack.c.b16 %v363, %v361
    %v398 = vpack.c.b16 %v364, %v362
    %v399 = vpack.c.b16 %v367, %v365
    %v400 = vpack.c.b16 %v368, %v366
    %433 = vmatprep.subr.bf16.mxu0 %v384
    %434 = vmatpush1.bf16.msra.mxu0 %v383
    %435 = vmatprep.subr.bf16.mxu0 %v382
    %436 = vmatpush1.bf16.msra.mxu0 %v381
    %437 = vmatprep.subr.bf16.mxu0 %v380
    %438 = vmatpush1.bf16.msra.mxu0 %v379
    %439 = vmatprep.subr.bf16.mxu0 %v378
    %440 = vmatpush1.bf16.msra.mxu0 %v377
    %441 = vmatprep.subr.bf16.mxu0 %v376
    %442 = vmatpush1.bf16.msra.mxu0 %v375
    %443 = vmatprep.subr.bf16.mxu0 %v374
    %444 = vmatpush1.bf16.msra.mxu0 %v373
    %445 = vmatprep.subr.bf16.mxu0 %v372
    %446 = vmatpush1.bf16.msra.mxu0 %v371
    %447 = vmatprep.subr.bf16.mxu0 %v370
    %448 = vmatpush1.bf16.msra.mxu0 %v369
    %449 = vmatprep.subr.bf16.mxu0 %v400
    %450 = vmatpush2.bf16.msra.mxu0 %v399
    %451 = vmatprep.subr.bf16.mxu0 %v398
    %452 = vmatpush2.bf16.msra.mxu0 %v397
    %453 = vmatprep.subr.bf16.mxu0 %v396
    %454 = vmatpush2.bf16.msra.mxu0 %v395
    %455 = vmatprep.subr.bf16.mxu0 %v394
    %456 = vmatpush2.bf16.msra.mxu0 %v393
    %457 = vmatprep.subr.bf16.mxu0 %v392
    %458 = vmatpush2.bf16.msra.mxu0 %v391
    %459 = vmatprep.subr.bf16.mxu0 %v390
    %460 = vmatpush2.bf16.msra.mxu0 %v389
    %461 = vmatprep.subr.bf16.mxu0 %v388
    %462 = vmatpush2.bf16.msra.mxu0 %v387
    %463 = vmatprep.subr.bf16.mxu0 %v386
    %464 = vmatpush2.bf16.msra.mxu0 %v385
    %465 = vmatprep.mubr.bf16.mxu0 %v240
    %466 = vmatmul.mubr.bf16.gmra.mxu0 %v239
    %v467 = vpop.f32.mrf.mxu0
    %v468 = vadd.f32 %v203, %v467
    %v469 = vpop.f32.mrf.mxu0
    %v470 = vadd.f32 %v205, %v469
    %v471 = vpop.f32.mrf.mxu0
    %v472 = vadd.f32 %v207, %v471
    %v473 = vpop.f32.mrf.mxu0
    %v474 = vadd.f32 %v209, %v473
    %475 = vdwg.mxu0
    %v476 = vld [vmem:[%s4] sm:$0x3]
    %v478 = vlaneseq
    %v479 = vshrl.u32 %v478, 7
    %v480 = vsub.s32 0, %v479
    %v481 = vrot.slane %v476, %v480
    %v482 = vlaneseq
    %v483 = vshrl.u32 %v482, 7
    %v484 = vsub.s32 1, %v483
    %v485 = vrot.slane %v476, %v484
    %v488 = vadd.f32 %v468, %v481
    %v489 = vadd.f32 %v470, %v485
    %v490 = vadd.f32 %v472, %v481
    %v491 = vadd.f32 %v474, %v485
    %vm492 = vcmp.gt.f32.partialorder %v488, 0.0
    %vm493 = vcmp.gt.f32.partialorder %v489, 0.0
    %vm494 = vcmp.gt.f32.partialorder %v490, 0.0
    %vm495 = vcmp.gt.f32.partialorder %v491, 0.0
    %v496 = vmul.f32 %v488, 0.01
    %v497 = vmul.f32 %v489, 0.01
    %v498 = vmul.f32 %v490, 0.01
    %v499 = vmul.f32 %v491, 0.01
    %v500 = vsel %vm492, %v488, %v496
    %v501 = vsel %vm493, %v489, %v497
    %v502 = vsel %vm494, %v490, %v498
    %v503 = vsel %vm495, %v491, %v499
    %v504 = vpack.c.bf16 %v502, %v500
    %v505 = vpack.c.bf16 %v503, %v501
    %v506 = vld [vmem:[#allocation9] sm:$0xf]
    %v507 = vld [vmem:[#allocation9 + $0x4] sm:$0xf]
    %v508 = vld [vmem:[#allocation9 + $0x8] sm:$0xf]
    %v509 = vld [vmem:[#allocation9 + $0xc] sm:$0xf]
    %v510 = vld [vmem:[#allocation9 + $0x10] sm:$0xf]
    %v511 = vld [vmem:[#allocation9 + $0x14] sm:$0xf]
    %v512 = vld [vmem:[#allocation9 + $0x18] sm:$0xf]
    %v513 = vld [vmem:[#allocation9 + $0x1c] sm:$0xf]
    %v514 = vld [vmem:[#allocation9 + $0x20] sm:$0xf]
    %v515 = vld [vmem:[#allocation9 + $0x24] sm:$0xf]
    %v516 = vld [vmem:[#allocation9 + $0x28] sm:$0xf]
    %v517 = vld [vmem:[#allocation9 + $0x2c] sm:$0xf]
    %v518 = vld [vmem:[#allocation9 + $0x30] sm:$0xf]
    %v519 = vld [vmem:[#allocation9 + $0x34] sm:$0xf]
    %v520 = vld [vmem:[#allocation9 + $0x38] sm:$0xf]
    %v521 = vld [vmem:[#allocation9 + $0x3c] sm:$0xf]
    %v522 = vld [vmem:[#allocation9 + $0x40] sm:$0xf]
    %v523 = vld [vmem:[#allocation9 + $0x44] sm:$0xf]
    %v524 = vld [vmem:[#allocation9 + $0x48] sm:$0xf]
    %v525 = vld [vmem:[#allocation9 + $0x4c] sm:$0xf]
    %v526 = vld [vmem:[#allocation9 + $0x50] sm:$0xf]
    %v527 = vld [vmem:[#allocation9 + $0x54] sm:$0xf]
    %v528 = vld [vmem:[#allocation9 + $0x58] sm:$0xf]
    %v529 = vld [vmem:[#allocation9 + $0x5c] sm:$0xf]
    %v530 = vld [vmem:[#allocation9 + $0x60] sm:$0xf]
    %v531 = vld [vmem:[#allocation9 + $0x64] sm:$0xf]
    %v532 = vld [vmem:[#allocation9 + $0x68] sm:$0xf]
    %v533 = vld [vmem:[#allocation9 + $0x6c] sm:$0xf]
    %v534 = vld [vmem:[#allocation9 + $0x70] sm:$0xf]
    %v535 = vld [vmem:[#allocation9 + $0x74] sm:$0xf]
    %v536 = vld [vmem:[#allocation9 + $0x78] sm:$0xf]
    %v537 = vld [vmem:[#allocation9 + $0x7c] sm:$0xf]
    %v538 = vld [vmem:[%s6] sm:$0x1]
    %v540 = vlaneseq
    %v541 = vshrl.u32 %v540, 7
    %v542 = vsub.s32 0, %v541
    %v543 = vrot.slane %v538, %v542
    %v577 = vunpack.c.l.b16 %v506
    %v578 = vunpack.c.l.b16 %v507
    %v579 = vunpack.c.l.b16 %v508
    %v580 = vunpack.c.l.b16 %v509
    %v581 = vunpack.c.l.b16 %v510
    %v582 = vunpack.c.l.b16 %v511
    %v583 = vunpack.c.l.b16 %v512
    %v584 = vunpack.c.l.b16 %v513
    %v585 = vunpack.c.l.b16 %v514
    %v586 = vunpack.c.l.b16 %v515
    %v587 = vunpack.c.l.b16 %v516
    %v588 = vunpack.c.l.b16 %v517
    %v589 = vunpack.c.l.b16 %v518
    %v590 = vunpack.c.l.b16 %v519
    %v591 = vunpack.c.l.b16 %v520
    %v592 = vunpack.c.l.b16 %v521
    %v593 = vunpack.c.l.b16 %v522
    %v594 = vunpack.c.l.b16 %v523
    %v595 = vunpack.c.l.b16 %v524
    %v596 = vunpack.c.l.b16 %v525
    %v597 = vunpack.c.l.b16 %v526
    %v598 = vunpack.c.l.b16 %v527
    %v599 = vunpack.c.l.b16 %v528
    %v600 = vunpack.c.l.b16 %v529
    %v601 = vunpack.c.l.b16 %v530
    %v602 = vunpack.c.l.b16 %v531
    %v603 = vunpack.c.l.b16 %v532
    %v604 = vunpack.c.l.b16 %v533
    %v605 = vunpack.c.l.b16 %v534
    %v606 = vunpack.c.l.b16 %v535
    %v607 = vunpack.c.l.b16 %v536
    %v608 = vunpack.c.l.b16 %v537
    %v609 = vpack.c.b16 %v578, %v577
    %v610 = vpack.c.b16 %v580, %v579
    %v611 = vpack.c.b16 %v582, %v581
    %v612 = vpack.c.b16 %v584, %v583
    %v613 = vpack.c.b16 %v586, %v585
    %v614 = vpack.c.b16 %v588, %v587
    %v615 = vpack.c.b16 %v590, %v589
    %v616 = vpack.c.b16 %v592, %v591
    %v617 = vpack.c.b16 %v594, %v593
    %v618 = vpack.c.b16 %v596, %v595
    %v619 = vpack.c.b16 %v598, %v597
    %v620 = vpack.c.b16 %v600, %v599
    %v621 = vpack.c.b16 %v602, %v601
    %v622 = vpack.c.b16 %v604, %v603
    %v623 = vpack.c.b16 %v606, %v605
    %v624 = vpack.c.b16 %v608, %v607
    %641 = vmatprep.subr.bf16.mxu0 0
    %642 = vmatpush1.bf16.msra.mxu0 %v616
    %643 = vmatprep.subr.bf16.mxu0 0
    %644 = vmatpush1.bf16.msra.mxu0 %v615
    %645 = vmatprep.subr.bf16.mxu0 0
    %646 = vmatpush1.bf16.msra.mxu0 %v614
    %647 = vmatprep.subr.bf16.mxu0 0
    %648 = vmatpush1.bf16.msra.mxu0 %v613
    %649 = vmatprep.subr.bf16.mxu0 0
    %650 = vmatpush1.bf16.msra.mxu0 %v612
    %651 = vmatprep.subr.bf16.mxu0 0
    %652 = vmatpush1.bf16.msra.mxu0 %v611
    %653 = vmatprep.subr.bf16.mxu0 0
    %654 = vmatpush1.bf16.msra.mxu0 %v610
    %655 = vmatprep.subr.bf16.mxu0 0
    %656 = vmatpush1.bf16.msra.mxu0 %v609
    %657 = vmatprep.subr.bf16.mxu0 0
    %658 = vmatpush2.bf16.msra.mxu0 %v624
    %659 = vmatprep.subr.bf16.mxu0 0
    %660 = vmatpush2.bf16.msra.mxu0 %v623
    %661 = vmatprep.subr.bf16.mxu0 0
    %662 = vmatpush2.bf16.msra.mxu0 %v622
    %663 = vmatprep.subr.bf16.mxu0 0
    %664 = vmatpush2.bf16.msra.mxu0 %v621
    %665 = vmatprep.subr.bf16.mxu0 0
    %666 = vmatpush2.bf16.msra.mxu0 %v620
    %667 = vmatprep.subr.bf16.mxu0 0
    %668 = vmatpush2.bf16.msra.mxu0 %v619
    %669 = vmatprep.subr.bf16.mxu0 0
    %670 = vmatpush2.bf16.msra.mxu0 %v618
    %671 = vmatprep.subr.bf16.mxu0 0
    %672 = vmatpush2.bf16.msra.mxu0 %v617
    %673 = vmatprep.mubr.bf16.mxu0 %v505
    %674 = vmatmul.mubr.bf16.gmra.mxu0 %v504
    %v675 = vpop.f32.mrf.mxu0
    %v676 = vadd.f32 %v543, %v675
    %v677 = vpop.f32.mrf.mxu0
    %v678 = vpop.f32.mrf.mxu0
    %v679 = vadd.f32 %v543, %v678
    %v680 = vpop.f32.mrf.mxu0
    %681 = vdwg.mxu0
    %vm682 = vcmp.gt.f32.partialorder %v676, 0.0
    %vm683 = vcmp.gt.f32.partialorder %v679, 0.0
    %v684 = vmul.f32 %v676, 0.01
    %v685 = vmul.f32 %v679, 0.01
    %v686 = vsel %vm682, %v676, %v684
    %v687 = vsel %vm683, %v679, %v685
    %v688 = vld [vmem:[%s7] sm:$0xf]
    %v689 = vpack.c.bf16 %v687, %v686
    %690 = vmatprep.subr.bf16.mxu0 0
    %691 = vmatpush1.bf16.xpose.msra.mxu0 0
    %692 = vmatprep.subr.bf16.mxu0 0
    %693 = vmatpush1.bf16.xpose.msra.mxu0 0
    %694 = vmatprep.subr.bf16.mxu0 0
    %695 = vmatpush1.bf16.xpose.msra.mxu0 0
    %696 = vmatprep.subr.bf16.mxu0 0
    %697 = vmatpush1.bf16.xpose.msra.mxu0 0
    %698 = vmatprep.subr.bf16.mxu0 0
    %699 = vmatpush1.bf16.xpose.msra.mxu0 0
    %700 = vmatprep.subr.bf16.mxu0 0
    %701 = vmatpush1.bf16.xpose.msra.mxu0 0
    %702 = vmatprep.subr.bf16.mxu0 0
    %703 = vmatpush1.bf16.xpose.msra.mxu0 0
    %704 = vmatprep.subr.bf16.mxu0 0
    %705 = vmatpush1.bf16.xpose.msra.mxu0 %v689
    %706 = vmatprep.subr.bf16.mxu0 0
    %707 = vmatpush2.bf16.xpose.msra.mxu0 0
    %708 = vmatprep.subr.bf16.mxu0 0
    %709 = vmatpush2.bf16.xpose.msra.mxu0 0
    %710 = vmatprep.subr.bf16.mxu0 0
    %711 = vmatpush2.bf16.xpose.msra.mxu0 0
    %712 = vmatprep.subr.bf16.mxu0 0
    %713 = vmatpush2.bf16.xpose.msra.mxu0 0
    %714 = vmatprep.subr.bf16.mxu0 0
    %715 = vmatpush2.bf16.xpose.msra.mxu0 0
    %716 = vmatprep.subr.bf16.mxu0 0
    %717 = vmatpush2.bf16.xpose.msra.mxu0 0
    %718 = vmatprep.subr.bf16.mxu0 0
    %719 = vmatpush2.bf16.xpose.msra.mxu0 0
    %720 = vmatprep.subr.bf16.mxu0 0
    %721 = vmatpush2.bf16.xpose.msra.mxu0 0
    %722 = vmatprep.mubr.bf16.mxu0 0
    %723 = vmatmul.mubr.bf16.gmra.mxu0 %v688
    %v724 = vpop.f32.mrf.mxu0
    %v725 = vadd.f32 0.0, %v724
    %v726 = vpop.f32.mrf.mxu0
    %v727 = vpop.f32.mrf.mxu0
    %v728 = vpop.f32.mrf.mxu0
    %729 = vdwg.mxu0
    %s730 = sld [smem:[#allocation2]]
    %v731 = vstv %s730
    %v732 = vadd.f32 %v725, %v731
    %vm733 = vcmask 122880
    %734 = vst.msk [vmem:[#allocation11] sm:$0x1] %vm733, %v732
    // Predicated region
    $region54: #{tpu_custom_call.1} parent=1 // pred_check
      _
    $region55: #{tpu_custom_call.1} parent=1 // pred_check_branch
      %736 = sbr.rel (0) target = $region57
    $region56: #{tpu_custom_call.1} parent=1 // pred_region
      %s738 = ssub.s32 16, 16
      %739 = vsyncadd [#allocation5], %s738
      %s741 = sshll.u32 [#allocation11], 4
      %s742 = int_to_ptr.vmem [resolvable:$true] %s741
      %744 = dma.vmem_to_hbm [thread:$0]  %s742, 16, %s9, [#allocation5]
    $region57: #{tpu_custom_call.1} parent=1 // pred_fallthru
      _
    // Predicated region
    $region58: #{tpu_custom_call.1} parent=1 // pred_check
      _
    $region59: #{tpu_custom_call.1} parent=1 // pred_check_branch
      %746 = sbr.rel (0) target = $region61
    $region60: #{tpu_custom_call.1} parent=1 // pred_region
      %747 = dma.done [#allocation5], 16
    $region61: #{tpu_custom_call.1} parent=1 // pred_fallthru
      _
    %748 = vsyncpa [#allocation4], 1
    %749 = vsyncpa [#allocation7], 1
    %750 = vsyncpa [#allocation10], 1
    %751 = vsyncpa [#allocation5], 1

</llo_original>
